<compile_context>
chip_gen: v7x
topology: tpu7x:2x2x1
jax: 0.10.0
libtpu: 0.0.40
codegen_flags: <defaults>
</compile_context>

<pallas_src>
import math

import jax
import jax.numpy as jnp
from jax.experimental import pallas as pl
from jax.experimental.pallas import tpu as pltpu


def _prelu_kernel(x_ref, sl_ref, sr_ref, o_ref):
    x = x_ref[...]
    # Select the per-feature scale first, then a single multiply.
    scale = jnp.where(x > 0, sr_ref[...], sl_ref[...])  # (1, W) broadcast
    o_ref[...] = x * scale


def _sublanes(dtype) -> int:
    # 8 for 32-bit, 16 for 16-bit, 32 for 8-bit dtypes (sublane packing).
    bits = jnp.dtype(dtype).itemsize * 8
    return max(8, 256 // bits)


def _round_up(x: int, m: int) -> int:
    return ((x + m - 1) // m) * m


def _pick_block_w(W: int) -> int:
    # Keep full W when modest; otherwise tile the lane axis with a divisor of
    # W that is a multiple of 128 (largest <= 2048). Fall back to full extent.
    if W <= 2048 or W % 128 != 0:
        return W
    for cand in range(2048, 127, -128):
        if W % cand == 0:
            return cand
    return W


def _pick_block_n(N: int, block_w: int, itemsize: int, sub: int,
                  target_bytes: int) -> int:
    bn = target_bytes // max(1, block_w * itemsize)
    bn = max(sub, min(int(bn), 8192))
    bn = (bn // sub) * sub
    # Guarantee >= 2 row-blocks when N allows it (v7x: 2 TCs share the grid).
    half = _round_up(pl.cdiv(N, 2), sub)
    bn = min(bn, max(sub, half))
    return max(sub, bn)


def prelu(x, scale_left, scale_right, *, block_n=None, block_w=None,
          target_block_bytes=4 * 1024 * 1024):
    """x: (N, W); scale_left/right: (W,). Returns (N, W)."""
    assert x.ndim == 2
    orig_N, orig_W = x.shape
    dtype = x.dtype

    # Match PyTorch: scales are cast to X.dtype before the multiply.
    sl = scale_left.astype(dtype)
    sr = scale_right.astype(dtype)

    xp = x
    N, W = orig_N, orig_W

    # ---- Lane-dense packing for non-128-multiple widths (copy-free) --------
    pack = 1
    if W % 128 != 0:
        cand = 128 // math.gcd(W, 128)  # smallest k with (k * W) % 128 == 0
        if cand > 1 and N % cand == 0:
            # Reshape of a contiguous row-major array: a bitcast, not a copy.
            pack = cand
            xp = xp.reshape(N // pack, pack * W)
            sl = jnp.tile(sl, pack)
            sr = jnp.tile(sr, pack)
            N, W = xp.shape
        # else: fall back to unpacked layout; full-extent lane block below.

    itemsize = jnp.dtype(dtype).itemsize
    sub = _sublanes(dtype)

    if block_w is None:
        block_w = _pick_block_w(W)
    assert W % block_w == 0, "block_w must divide the (packed) width"

    if block_n is None:
        block_n = _pick_block_n(N, block_w, itemsize, sub, target_block_bytes)
    block_n = max(sub, (block_n // sub) * sub)

    sl2 = sl.reshape(1, W)
    sr2 = sr.reshape(1, W)

    # Grid: lane-blocks OUTER (constant scale index across inner row steps),
    # row-blocks INNER with a ragged tail handled by Pallas masked stores --
    # no jnp.pad / output slice, i.e. no extra HBM passes.
    n_row_blocks = pl.cdiv(N, block_n)
    grid = (W // block_w, n_row_blocks)

    block_bytes = block_n * block_w * itemsize
    # in + out, double-buffered, plus scales and headroom.
    vmem_limit = min(int(4 * block_bytes + 4 * (1 << 20)), 64 * (1 << 20))

    out = pl.pallas_call(
        _prelu_kernel,
        out_shape=jax.ShapeDtypeStruct((N, W), dtype),
        grid=grid,
        in_specs=[
            pl.BlockSpec((block_n, block_w), lambda j, i: (i, j)),
            pl.BlockSpec((1, block_w), lambda j, i: (0, j)),  # resident scales
            pl.BlockSpec((1, block_w), lambda j, i: (0, j)),
        ],
        out_specs=pl.BlockSpec((block_n, block_w), lambda j, i: (i, j)),
        compiler_params=pltpu.CompilerParams(
            dimension_semantics=("parallel", "parallel"),
            vmem_limit_bytes=vmem_limit),
    )(xp, sl2, sr2)

    # Undo packing (free reshape -- N was exactly divisible by pack).
    if pack > 1:
        out = out.reshape(orig_N, orig_W)
    return out


def _reference(x, scale_left, scale_right):
    sl = scale_left.astype(x.dtype)[None, :]
    sr = scale_right.astype(x.dtype)[None, :]
    return jnp.where(x > 0, x * sr, x * sl)


if __name__ == "__main__":
    key = jax.random.PRNGKey(0)
    k_x, k_l, k_r, k_x2, k_x3 = jax.random.split(key, 5)

    # Small shape consistent with the module (PReLU over a [batch, width] X):
    # exercises the lane-dense packing path (W=32 -> pack=4 -> lane width 128).
    batch, width = 8, 32
    x = jax.random.normal(k_x, (batch, width), dtype=jnp.float32)
    scale_left = jax.random.normal(k_l, (width,), dtype=jnp.float32)
    scale_right = jax.random.normal(k_r, (width,), dtype=jnp.float32)

    out = jax.block_until_ready(prelu(x, scale_left, scale_right))
    ref = _reference(x, scale_left, scale_right)
    assert out.shape == (batch, width)
    assert jnp.allclose(out, ref, atol=1e-6), "mismatch vs reference (W=32)"

    # Ragged N with lane-aligned W: multi-step grid with a partial tail block
    # (no padding copies anywhere).
    n2, w2 = 1000, 256
    x2 = jax.random.normal(k_x2, (n2, w2), dtype=jnp.float32)
    sl2 = jax.random.normal(k_l, (w2,), dtype=jnp.float32)
    sr2 = jax.random.normal(k_r, (w2,), dtype=jnp.float32)
    out2 = jax.block_until_ready(prelu(x2, sl2, sr2, block_n=256))
    ref2 = _reference(x2, sl2, sr2)
    assert out2.shape == (n2, w2)
    assert jnp.allclose(out2, ref2, atol=1e-6), "mismatch vs reference (ragged N)"

    # Ragged N AND narrow W where packing doesn't apply (N % pack != 0):
    # unpacked fallback path with full-extent lane block + masked stores.
    n3, w3 = 5, 32
    x3 = jax.random.normal(k_x3, (n3, w3), dtype=jnp.float32)
    out3 = jax.block_until_ready(prelu(x3, scale_left, scale_right))
    ref3 = _reference(x3, scale_left, scale_right)
    assert out3.shape == (n3, w3)
    assert jnp.allclose(out3, ref3, atol=1e-6), "mismatch vs reference (fallback)"

    print("KERNEL_OK")
</pallas_src>

<mosaic_0001>
module attributes {stable_mosaic.version = 11 : i64} {
  func.func @_prelu_kernel(%arg0: i32, %arg1: i32, %arg2: memref<8x128xf32, #tpu.memory_space<vmem>>, %arg3: memref<1x128xf32, #tpu.memory_space<vmem>>, %arg4: memref<1x128xf32, #tpu.memory_space<vmem>>, %arg5: memref<8x128xf32, #tpu.memory_space<vmem>>) attributes {dimension_semantics = [#tpu.dimension_semantics<parallel>, #tpu.dimension_semantics<parallel>], iteration_bounds = array<i64: 1, 1>, scalar_prefetch = 0 : i64, scratch_operands = 0 : i64, tpu.core_type = #tpu.core_type<tc>, window_params = [{transform_indices = @transform_0, window_bounds = array<i64: 8, 128>}, {transform_indices = @transform_1, window_bounds = array<i64: 1, 128>}, {transform_indices = @transform_2, window_bounds = array<i64: 1, 128>}, {transform_indices = @transform_3, window_bounds = array<i64: 8, 128>}]} {
    %c0 = arith.constant 0 : index
    %c0_0 = arith.constant 0 : index
    %0 = vector.load %arg2[%c0, %c0_0] : memref<8x128xf32, #tpu.memory_space<vmem>>, vector<8x128xf32>
    %cst = arith.constant 0.000000e+00 : f32
    %1 = vector.broadcast %cst : f32 to vector<8x128xf32>
    %2 = arith.cmpf ogt, %0, %1 : vector<8x128xf32>
    %c0_1 = arith.constant 0 : index
    %c0_2 = arith.constant 0 : index
    %3 = vector.load %arg4[%c0_1, %c0_2] : memref<1x128xf32, #tpu.memory_space<vmem>>, vector<1x128xf32>
    %c0_3 = arith.constant 0 : index
    %c0_4 = arith.constant 0 : index
    %4 = vector.load %arg3[%c0_3, %c0_4] : memref<1x128xf32, #tpu.memory_space<vmem>>, vector<1x128xf32>
    %5 = vector.shape_cast %3 : vector<1x128xf32> to vector<1x128xf32>
    %6 = vector.broadcast %5 : vector<1x128xf32> to vector<8x128xf32>
    %7 = vector.shape_cast %4 : vector<1x128xf32> to vector<1x128xf32>
    %8 = vector.broadcast %7 : vector<1x128xf32> to vector<8x128xf32>
    %9 = arith.select %2, %6, %8 : vector<8x128xi1>, vector<8x128xf32>
    %10 = arith.mulf %0, %9 : vector<8x128xf32>
    %c0_5 = arith.constant 0 : index
    %c0_6 = arith.constant 0 : index
    %11 = vector.load %arg5[%c0_5, %c0_6] : memref<8x128xf32, #tpu.memory_space<vmem>>, vector<8x128xf32>
    tpu.vector_store %arg5[%c0_5, %c0_6], %10 {strides = array<i32>} : memref<8x128xf32, #tpu.memory_space<vmem>>, vector<8x128xf32>,
    return
  }
  func.func @transform_0(%arg0: i32, %arg1: i32) -> (i32, i32) {
    %c0_i32 = arith.constant 0 : i32
    return %arg1, %arg0 : i32, i32
  }
  func.func @transform_1(%arg0: i32, %arg1: i32) -> (i32, i32) {
    %c0_i32 = arith.constant 0 : i32
    %c0_i32_0 = arith.constant 0 : i32
    return %c0_i32, %arg0 : i32, i32
  }
  func.func @transform_2(%arg0: i32, %arg1: i32) -> (i32, i32) {
    %c0_i32 = arith.constant 0 : i32
    %c0_i32_0 = arith.constant 0 : i32
    return %c0_i32, %arg0 : i32, i32
  }
  func.func @transform_3(%arg0: i32, %arg1: i32) -> (i32, i32) {
    %c0_i32 = arith.constant 0 : i32
    return %arg1, %arg0 : i32, i32
  }
}

</mosaic_0001>

<llo_original>
// kernel: tpu_custom_call.1
$region0: #{tpu_custom_call.1}
  #allocation0 [shape = 'u32[]', space=smem, size = 0x4, offset = 0x4, fixed_abs, tag = 'smem constant byte address 0x4 - core index']
  #allocation1 [shape = 'u32[144,128]{1,0:T(1,128)}', space=vmem, size = 0x12000, scoped, tag = 'internal scratch']
  %s0 = inlined_call_operand.hbm [shape: f32[2,128], index: 0, kind: input, shape index: {}]
  %s1 = inlined_call_operand.vmem [shape: f32[1,128], index: 1, kind: input, shape index: {}]
  %s2 = inlined_call_operand.vmem [shape: f32[1,128], index: 2, kind: input, shape index: {}]
  %s3 = inlined_call_operand.hbm [shape: f32[2,128], index: 3, kind: output, shape index: {}]
  %s4 = sld [smem:[#allocation0]]
  $region26: #{tpu_custom_call.1} parent=0
    _
  %s6 = ssub.s32 1, %s4
  %s7 = scalar_select 0, %s6, %s4
  $region1: #{tpu_custom_call.1} parent=0
    #allocation2 [shape = 'u8[4096]{0}', space=vmem, size = 0x1000, scoped, tag = 'input window, operand 0, single buffered']
    #allocation3 [shape = 's32[1]{0}', space=sflag, size = 0x4, scoped, tag = 'scoped memory for tpu_custom_call.1']
    #allocation4 [shape = 's32[1]{0}', space=sflag, size = 0x4, scoped, tag = 'scoped memory for tpu_custom_call.1']
    #allocation5 [shape = 'u8[4096]{0}', space=vmem, size = 0x1000, scoped, tag = 'output window, operand 0, single buffered']
    %8 = vsyncpa [#allocation3], 0
    %9 = vsyncpa [#allocation4], 0
    // Predicated region
    $region2: #{tpu_custom_call.1} parent=1 // pred_check
      _
    $region3: #{tpu_custom_call.1} parent=1 // pred_check_branch
      %11 = sbr.rel (0) target = $region5
    $region4: #{tpu_custom_call.1} parent=1 // pred_region
      %s13 = ssub.s32 128, 32
      %14 = vsyncadd [#allocation3], %s13
      %s15 = sshll.u32 [#allocation2], 4
      %s16 = int_to_ptr.vmem [resolvable:$true] %s15
      %21 = dma.hbm_to_vmem [thread:$0]  %s0, 32, %s16, [#allocation3], 32, 32, 2
    $region5: #{tpu_custom_call.1} parent=1 // pred_fallthru
      _
    // Predicated region
    $region6: #{tpu_custom_call.1} parent=1 // pred_check
      _
    $region7: #{tpu_custom_call.1} parent=1 // pred_check_branch
      %23 = sbr.rel (0) target = $region9
    $region8: #{tpu_custom_call.1} parent=1 // pred_region
      _
    $region9: #{tpu_custom_call.1} parent=1 // pred_fallthru
      _
    // Predicated region
    $region10: #{tpu_custom_call.1} parent=1 // pred_check
      _
    $region11: #{tpu_custom_call.1} parent=1 // pred_check_branch
      %25 = sbr.rel (0) target = $region13
    $region12: #{tpu_custom_call.1} parent=1 // pred_region
      _
    $region13: #{tpu_custom_call.1} parent=1 // pred_fallthru
      _
    // Predicated region
    $region14: #{tpu_custom_call.1} parent=1 // pred_check
      _
    $region15: #{tpu_custom_call.1} parent=1 // pred_check_branch
      %27 = sbr.rel (0) target = $region17
    $region16: #{tpu_custom_call.1} parent=1 // pred_region
      %28 = dma.done [#allocation3], 128
    $region17: #{tpu_custom_call.1} parent=1 // pred_fallthru
      _
    %v29 = vld [vmem:[#allocation2] sm:$0xff]
    %vm30 = vcmp.gt.f32.partialorder %v29, 0.0
    %v31 = vld [vmem:[%s2] sm:$0x1]
    %v32 = vld [vmem:[%s1] sm:$0x1]
    %v34 = vlaneseq
    %v35 = vshrl.u32 %v34, 7
    %v36 = vsub.s32 0, %v35
    %v37 = vrot.slane %v31, %v36
    %v40 = vlaneseq
    %v41 = vshrl.u32 %v40, 7
    %v42 = vsub.s32 0, %v41
    %v43 = vrot.slane %v32, %v42
    %v45 = vsel %vm30, %v37, %v43
    %v46 = vmul.f32 %v29, %v45
    %47 = vst [vmem:[#allocation5] sm:$0xff] %v46
    // Predicated region
    $region18: #{tpu_custom_call.1} parent=1 // pred_check
      _
    $region19: #{tpu_custom_call.1} parent=1 // pred_check_branch
      %49 = sbr.rel (0) target = $region21
    $region20: #{tpu_custom_call.1} parent=1 // pred_region
      %s51 = ssub.s32 128, 32
      %52 = vsyncadd [#allocation4], %s51
      %s53 = sshll.u32 [#allocation5], 4
      %s54 = int_to_ptr.vmem [resolvable:$true] %s53
      %59 = dma.vmem_to_hbm [thread:$0]  %s54, 32, %s3, [#allocation4], 32, 32, 2
    $region21: #{tpu_custom_call.1} parent=1 // pred_fallthru
      _
    // Predicated region
    $region22: #{tpu_custom_call.1} parent=1 // pred_check
      _
    $region23: #{tpu_custom_call.1} parent=1 // pred_check_branch
      %61 = sbr.rel (0) target = $region25
    $region24: #{tpu_custom_call.1} parent=1 // pred_region
      %62 = dma.done [#allocation4], 128
    $region25: #{tpu_custom_call.1} parent=1 // pred_fallthru
      _
    %63 = vsyncpa [#allocation3], 1
    %64 = vsyncpa [#allocation4], 1

</llo_original>
